<compile_context>
chip_gen: v7x
topology: tpu7x:2x2x1
jax: 0.10.0
libtpu: 0.0.40
codegen_flags: <defaults>
</compile_context>

<pallas_src>
import functools
import math

import jax
import jax.numpy as jnp
from jax.experimental import pallas as pl
from jax.experimental.pallas import tpu as pltpu

NDIM = 8  # fixed in the PyTorch module


def _ema_kernel(x_ref, p_ref, g_ref, o_ref, s_ref, *, chunk):
    """One grid step = one (l_tile, d_tile) block of one batch element.

    x_ref : (l_tile, d_tile)  input block (model dtype)
    p_ref : (NDIM, d_tile)    decay   p_n[d] = sigmoid(delta[d, n])
    g_ref : (NDIM, d_tile)    weight  g_n[d] = gamma[d, n] * scale
    o_ref : (l_tile, d_tile)  output block (model dtype)
    s_ref : (NDIM, d_tile)    fp32 EMA state, carried across L tiles
    """
    # Reset the recurrence state at the start of each (batch, d-tile) sequence.
    @pl.when(pl.program_id(2) == 0)
    def _():
        s_ref[...] = jnp.zeros_like(s_ref)

    p = p_ref[...]                       # fp32 (NDIM, d_tile)
    g = g_ref[...]                       # fp32 (NDIM, d_tile), scale folded in
    l_tile = x_ref.shape[0]
    num_chunks = l_tile // chunk         # static

    def chunk_body(c, s):
        base = pl.multiple_of(c * chunk, chunk)
        xc = x_ref[pl.ds(base, chunk), :].astype(jnp.float32)   # (chunk, d_tile)
        rows = []
        for j in range(chunk):           # static unroll over the sublane tile
            # s_n[t, d] = p_n[d] * s_n[t-1, d] + x[t, d]
            s = p * s + xc[j:j + 1, :]
            # y[t, d] = sum_n g_n[d] * s_n[t, d]   (sublane reduce on XLU)
            rows.append(jnp.sum(g * s, axis=0, keepdims=True))
        y = jnp.concatenate(rows, axis=0)                        # (chunk, d_tile)
        o_ref[pl.ds(base, chunk), :] = y.astype(o_ref.dtype)
        return s

    s_final = jax.lax.fori_loop(0, num_chunks, chunk_body, s_ref[...])
    s_ref[...] = s_final


def newgpt_ema(x, delta, gamma, *, l_tile_max=512, d_tile_max=512):
    """x: (B, L, D); delta, gamma: (D, NDIM, 1) as in the PyTorch module."""
    B, L, D = x.shape
    scale = math.sqrt(1.0 / D)

    # ---- parameter-only precompute, hoisted out of the per-batch grid ----
    # p = sigmoid(delta), g = gamma * scale, both transposed so the embedding
    # channels sit on the lane axis.  No log/exp inside the kernel.
    p = jax.nn.sigmoid(delta[..., 0].astype(jnp.float32)).T          # (NDIM, D)
    g = (gamma[..., 0].astype(jnp.float32) * scale).T                # (NDIM, D)

    # ---- tiling ----
    chunk = 8 if x.dtype.itemsize >= 4 else 16   # sublane tile (fp32 / bf16 packing)

    if D % 128 == 0:
        d_tile_max = max(128, (d_tile_max // 128) * 128)
        d_tile = min(D, d_tile_max)
        while D % d_tile != 0:
            d_tile -= 128
    else:
        d_tile = D                                # full-dim block (still legal)

    l_tile_max = max(chunk, (l_tile_max // chunk) * chunk)
    l_tile = min(l_tile_max, ((L + chunk - 1) // chunk) * chunk)
    l_pad = ((L + l_tile - 1) // l_tile) * l_tile

    x_p = x if l_pad == L else jnp.pad(x, ((0, 0), (0, l_pad - L), (0, 0)))

    grid = (B, D // d_tile, l_pad // l_tile)      # L (carry) axis last

    kernel = functools.partial(_ema_kernel, chunk=chunk)
    out = pl.pallas_call(
        kernel,
        out_shape=jax.ShapeDtypeStruct((B, l_pad, D), x.dtype),
        grid=grid,
        in_specs=[
            pl.BlockSpec((pl.Squeezed(), l_tile, d_tile),
                         lambda b, d, l: (b, l, d)),
            pl.BlockSpec((NDIM, d_tile), lambda b, d, l: (0, d)),
            pl.BlockSpec((NDIM, d_tile), lambda b, d, l: (0, d)),
        ],
        out_specs=pl.BlockSpec((pl.Squeezed(), l_tile, d_tile),
                               lambda b, d, l: (b, l, d)),
        scratch_shapes=[pltpu.VMEM((NDIM, d_tile), jnp.float32)],
        compiler_params=pltpu.CompilerParams(
            dimension_semantics=("parallel", "parallel", "arbitrary"),
            vmem_limit_bytes=32 * 1024 * 1024),
    )(x_p, p, g)

    return out[:, :L, :] if l_pad != L else out


def _reference(x, delta, gamma):
    """Pure-JAX FFT reference mirroring the PyTorch forward exactly."""
    B, L, D = x.shape
    scale = math.sqrt(1.0 / D)
    p = jax.nn.sigmoid(delta.astype(jnp.float32))               # (D, NDIM, 1)
    k = jnp.arange(L, dtype=jnp.float32) * jnp.log(p)           # (D, NDIM, L)
    k = jnp.exp(k)
    k = jnp.einsum('dnl,dn->dl', k, gamma[..., 0].astype(jnp.float32) * scale)
    h = jnp.transpose(x, (0, 2, 1)).astype(jnp.float32)         # (B, D, L)
    kf = jnp.fft.rfft(k, n=2 * L)
    hf = jnp.fft.rfft(h, n=2 * L)
    out = jnp.fft.irfft(hf * kf, n=2 * L)[..., :L]
    return jnp.transpose(out, (0, 2, 1)).astype(x.dtype)


if __name__ == "__main__":
    B, L, D = 2, 64, 384  # batch, sequence length, n_embd (small demo shapes)

    key = jax.random.PRNGKey(0)
    k_x, k_d, k_g = jax.random.split(key, 3)

    # Parameter init matching reset_parameters(): delta ~ N(0, 0.2), gamma ~ N(0, 1).
    delta = 0.2 * jax.random.normal(k_d, (D, NDIM, 1), dtype=jnp.float32)
    gamma = jax.random.normal(k_g, (D, NDIM, 1), dtype=jnp.float32)
    x = jax.random.normal(k_x, (B, L, D), dtype=jnp.float32)

    ref = jax.block_until_ready(_reference(x, delta, gamma))

    # Small tiles: exercise the L-tile carry and multiple D tiles (grid 2x3x2).
    out = jax.block_until_ready(newgpt_ema(x, delta, gamma,
                                           l_tile_max=32, d_tile_max=128))
    assert out.shape == (B, L, D) and out.dtype == x.dtype
    assert jnp.allclose(out, ref, atol=2e-4, rtol=2e-4), "mismatch (tiled) vs FFT reference"

    # Default tiles: single (L, D) block per batch element.
    out2 = jax.block_until_ready(newgpt_ema(x, delta, gamma))
    assert jnp.allclose(out2, ref, atol=2e-4, rtol=2e-4), "mismatch (default) vs FFT reference"

    print("KERNEL_OK")
</pallas_src>

<mosaic_0001>
module attributes {stable_mosaic.version = 11 : i64} {
  func.func @_ema_kernel(%arg0: i32, %arg1: i32, %arg2: i32, %arg3: memref<1x32x128xf32, #tpu.memory_space<vmem>>, %arg4: memref<8x128xf32, #tpu.memory_space<vmem>>, %arg5: memref<8x128xf32, #tpu.memory_space<vmem>>, %arg6: memref<1x32x128xf32, #tpu.memory_space<vmem>>, %arg7: memref<8x128xf32, #tpu.memory_space<vmem>>) attributes {dimension_semantics = [#tpu.dimension_semantics<parallel>, #tpu.dimension_semantics<parallel>, #tpu.dimension_semantics<arbitrary>], iteration_bounds = array<i64: 2, 3, 2>, scalar_prefetch = 0 : i64, scratch_operands = 1 : i64, tpu.core_type = #tpu.core_type<tc>, window_params = [{transform_indices = @transform_0, window_bounds = array<i64: 1, 32, 128>}, {transform_indices = @transform_1, window_bounds = array<i64: 8, 128>}, {transform_indices = @transform_2, window_bounds = array<i64: 8, 128>}, {transform_indices = @transform_3, window_bounds = array<i64: 1, 32, 128>}]} {
    %c0_i32 = arith.constant 0 : i32
    %0 = arith.cmpi eq, %arg2, %c0_i32 : i32
    %1 = arith.extui %0 : i1 to i32
    %c0_i32_0 = arith.constant 0 : i32
    %2 = arith.cmpi ne, %1, %c0_i32_0 : i32
    scf.if %2 {
      %cst = arith.constant 0.000000e+00 : f32
      %9 = vector.broadcast %cst : f32 to vector<8x128xf32>
      %c0_10 = arith.constant 0 : index
      %c0_11 = arith.constant 0 : index
      %10 = vector.load %arg7[%c0_10, %c0_11] : memref<8x128xf32, #tpu.memory_space<vmem>>, vector<8x128xf32>
      tpu.vector_store %arg7[%c0_10, %c0_11], %9 {strides = array<i32>} : memref<8x128xf32, #tpu.memory_space<vmem>>, vector<8x128xf32>,
    } else {
    }
    %c0 = arith.constant 0 : index
    %c0_1 = arith.constant 0 : index
    %3 = vector.load %arg4[%c0, %c0_1] : memref<8x128xf32, #tpu.memory_space<vmem>>, vector<8x128xf32>
    %c0_2 = arith.constant 0 : index
    %c0_3 = arith.constant 0 : index
    %4 = vector.load %arg5[%c0_2, %c0_3] : memref<8x128xf32, #tpu.memory_space<vmem>>, vector<8x128xf32>
    %c0_4 = arith.constant 0 : index
    %c0_5 = arith.constant 0 : index
    %5 = vector.load %arg7[%c0_4, %c0_5] : memref<8x128xf32, #tpu.memory_space<vmem>>, vector<8x128xf32>
    %c0_i32_6 = arith.constant 0 : i32
    %c4_i32 = arith.constant 4 : i32
    %6 = arith.addi %c0_i32_6, %c4_i32 : i32
    %c1_i32 = arith.constant 1 : i32
    %7 = scf.for %arg8 = %c0_i32_6 to %6 step %c1_i32 iter_args(%arg9 = %5) -> (vector<8x128xf32>)  : i32 {
      %c8_i32 = arith.constant 8 : i32
      %9 = arith.muli %arg8, %c8_i32 : i32
      %10 = tpu.assume_multiple %9, 8 : i32
      %c0_10 = arith.constant 0 : index
      %11 = arith.index_cast %10 : i32 to index
      %c0_11 = arith.constant 0 : index
      %12 = vector.load %arg3[%c0_10, %11, %c0_11] : memref<1x32x128xf32, #tpu.memory_space<vmem>>, vector<1x8x128xf32>
      %13 = vector.shape_cast %12 : vector<1x8x128xf32> to vector<8x128xf32>
      %14 = arith.mulf %3, %arg9 : vector<8x128xf32>
      %15 = vector.extract_strided_slice %13 {offsets = [0, 0], sizes = [1, 128], strides = [1, 1]} : vector<8x128xf32> to vector<1x128xf32>
      %16 = vector.broadcast %15 : vector<1x128xf32> to vector<8x128xf32>
      %17 = arith.addf %14, %16 : vector<8x128xf32>
      %18 = arith.mulf %4, %17 : vector<8x128xf32>
      %cst = arith.constant dense<0.000000e+00> : vector<128xf32>
      %19 = vector.multi_reduction <add>, %18, %cst [0] : vector<8x128xf32> to vector<128xf32>
      %20 = vector.shape_cast %19 : vector<128xf32> to vector<1x128xf32>
      %21 = arith.mulf %3, %17 : vector<8x128xf32>
      %22 = vector.extract_strided_slice %13 {offsets = [1, 0], sizes = [1, 128], strides = [1, 1]} : vector<8x128xf32> to vector<1x128xf32>
      %23 = vector.broadcast %22 : vector<1x128xf32> to vector<8x128xf32>
      %24 = arith.addf %21, %23 : vector<8x128xf32>
      %25 = arith.mulf %4, %24 : vector<8x128xf32>
      %cst_12 = arith.constant dense<0.000000e+00> : vector<128xf32>
      %26 = vector.multi_reduction <add>, %25, %cst_12 [0] : vector<8x128xf32> to vector<128xf32>
      %27 = vector.shape_cast %26 : vector<128xf32> to vector<1x128xf32>
      %28 = arith.mulf %3, %24 : vector<8x128xf32>
      %29 = vector.extract_strided_slice %13 {offsets = [2, 0], sizes = [1, 128], strides = [1, 1]} : vector<8x128xf32> to vector<1x128xf32>
      %30 = vector.broadcast %29 : vector<1x128xf32> to vector<8x128xf32>
      %31 = arith.addf %28, %30 : vector<8x128xf32>
      %32 = arith.mulf %4, %31 : vector<8x128xf32>
      %cst_13 = arith.constant dense<0.000000e+00> : vector<128xf32>
      %33 = vector.multi_reduction <add>, %32, %cst_13 [0] : vector<8x128xf32> to vector<128xf32>
      %34 = vector.shape_cast %33 : vector<128xf32> to vector<1x128xf32>
      %35 = arith.mulf %3, %31 : vector<8x128xf32>
      %36 = vector.extract_strided_slice %13 {offsets = [3, 0], sizes = [1, 128], strides = [1, 1]} : vector<8x128xf32> to vector<1x128xf32>
      %37 = vector.broadcast %36 : vector<1x128xf32> to vector<8x128xf32>
      %38 = arith.addf %35, %37 : vector<8x128xf32>
      %39 = arith.mulf %4, %38 : vector<8x128xf32>
      %cst_14 = arith.constant dense<0.000000e+00> : vector<128xf32>
      %40 = vector.multi_reduction <add>, %39, %cst_14 [0] : vector<8x128xf32> to vector<128xf32>
      %41 = vector.shape_cast %40 : vector<128xf32> to vector<1x128xf32>
      %42 = arith.mulf %3, %38 : vector<8x128xf32>
      %43 = vector.extract_strided_slice %13 {offsets = [4, 0], sizes = [1, 128], strides = [1, 1]} : vector<8x128xf32> to vector<1x128xf32>
      %44 = vector.broadcast %43 : vector<1x128xf32> to vector<8x128xf32>
      %45 = arith.addf %42, %44 : vector<8x128xf32>
      %46 = arith.mulf %4, %45 : vector<8x128xf32>
      %cst_15 = arith.constant dense<0.000000e+00> : vector<128xf32>
      %47 = vector.multi_reduction <add>, %46, %cst_15 [0] : vector<8x128xf32> to vector<128xf32>
      %48 = vector.shape_cast %47 : vector<128xf32> to vector<1x128xf32>
      %49 = arith.mulf %3, %45 : vector<8x128xf32>
      %50 = vector.extract_strided_slice %13 {offsets = [5, 0], sizes = [1, 128], strides = [1, 1]} : vector<8x128xf32> to vector<1x128xf32>
      %51 = vector.broadcast %50 : vector<1x128xf32> to vector<8x128xf32>
      %52 = arith.addf %49, %51 : vector<8x128xf32>
      %53 = arith.mulf %4, %52 : vector<8x128xf32>
      %cst_16 = arith.constant dense<0.000000e+00> : vector<128xf32>
      %54 = vector.multi_reduction <add>, %53, %cst_16 [0] : vector<8x128xf32> to vector<128xf32>
      %55 = vector.shape_cast %54 : vector<128xf32> to vector<1x128xf32>
      %56 = arith.mulf %3, %52 : vector<8x128xf32>
      %57 = vector.extract_strided_slice %13 {offsets = [6, 0], sizes = [1, 128], strides = [1, 1]} : vector<8x128xf32> to vector<1x128xf32>
      %58 = vector.broadcast %57 : vector<1x128xf32> to vector<8x128xf32>
      %59 = arith.addf %56, %58 : vector<8x128xf32>
      %60 = arith.mulf %4, %59 : vector<8x128xf32>
      %cst_17 = arith.constant dense<0.000000e+00> : vector<128xf32>
      %61 = vector.multi_reduction <add>, %60, %cst_17 [0] : vector<8x128xf32> to vector<128xf32>
      %62 = vector.shape_cast %61 : vector<128xf32> to vector<1x128xf32>
      %63 = arith.mulf %3, %59 : vector<8x128xf32>
      %64 = vector.extract_strided_slice %13 {offsets = [7, 0], sizes = [1, 128], strides = [1, 1]} : vector<8x128xf32> to vector<1x128xf32>
      %65 = vector.broadcast %64 : vector<1x128xf32> to vector<8x128xf32>
      %66 = arith.addf %63, %65 : vector<8x128xf32>
      %67 = arith.mulf %4, %66 : vector<8x128xf32>
      %cst_18 = arith.constant dense<0.000000e+00> : vector<128xf32>
      %68 = vector.multi_reduction <add>, %67, %cst_18 [0] : vector<8x128xf32> to vector<128xf32>
      %69 = vector.shape_cast %68 : vector<128xf32> to vector<1x128xf32>
      %70 = tpu.concatenate %20, %27, %34, %41, %48, %55, %62, %69 in 0 : vector<1x128xf32>, vector<1x128xf32>, vector<1x128xf32>, vector<1x128xf32>, vector<1x128xf32>, vector<1x128xf32>, vector<1x128xf32>, vector<1x128xf32> -> vector<8x128xf32>
      %c0_19 = arith.constant 0 : index
      %71 = arith.index_cast %10 : i32 to index
      %c0_20 = arith.constant 0 : index
      %72 = vector.load %arg6[%c0_19, %71, %c0_20] : memref<1x32x128xf32, #tpu.memory_space<vmem>>, vector<1x8x128xf32>
      %73 = vector.shape_cast %72 : vector<1x8x128xf32> to vector<8x128xf32>
      %74 = vector.shape_cast %70 : vector<8x128xf32> to vector<1x8x128xf32>
      tpu.vector_store %arg6[%c0_19, %71, %c0_20], %74 {strides = array<i32>} : memref<1x32x128xf32, #tpu.memory_space<vmem>>, vector<1x8x128xf32>,
      scf.yield %66 : vector<8x128xf32>
    }
    %c4_i32_7 = arith.constant 4 : i32
    %c0_8 = arith.constant 0 : index
    %c0_9 = arith.constant 0 : index
    %8 = vector.load %arg7[%c0_8, %c0_9] : memref<8x128xf32, #tpu.memory_space<vmem>>, vector<8x128xf32>
    tpu.vector_store %arg7[%c0_8, %c0_9], %7 {strides = array<i32>} : memref<8x128xf32, #tpu.memory_space<vmem>>, vector<8x128xf32>,
    return
  }
  func.func @transform_0(%arg0: i32, %arg1: i32, %arg2: i32) -> (i32, i32, i32) {
    %c0_i32 = arith.constant 0 : i32
    return %arg0, %arg2, %arg1 : i32, i32, i32
  }
  func.func @transform_1(%arg0: i32, %arg1: i32, %arg2: i32) -> (i32, i32) {
    %c0_i32 = arith.constant 0 : i32
    %c0_i32_0 = arith.constant 0 : i32
    return %c0_i32, %arg1 : i32, i32
  }
  func.func @transform_2(%arg0: i32, %arg1: i32, %arg2: i32) -> (i32, i32) {
    %c0_i32 = arith.constant 0 : i32
    %c0_i32_0 = arith.constant 0 : i32
    return %c0_i32, %arg1 : i32, i32
  }
  func.func @transform_3(%arg0: i32, %arg1: i32, %arg2: i32) -> (i32, i32, i32) {
    %c0_i32 = arith.constant 0 : i32
    return %arg0, %arg2, %arg1 : i32, i32, i32
  }
}

</mosaic_0001>

<llo_original>
// kernel: tpu_custom_call.1
$region0: #{tpu_custom_call.1}
  #allocation0 [shape = 'u32[]', space=smem, size = 0x4, offset = 0x4, fixed_abs, tag = 'smem constant byte address 0x4 - core index']
  #allocation1 [shape = 'u32[144,128]{1,0:T(1,128)}', space=vmem, size = 0x12000, scoped, tag = 'internal scratch']
  #allocation2 [shape = 'f32[8,128]{1,0:T(8,128)}', space=vmem, size = 0x1000, scoped, tag = 'scratch operand']
  %s0 = inlined_call_operand.hbm [shape: f32[2,64,384], index: 0, kind: input, shape index: {}]
  %s1 = inlined_call_operand.hbm [shape: f32[8,384], index: 1, kind: input, shape index: {}]
  %s2 = inlined_call_operand.hbm [shape: f32[8,384], index: 2, kind: input, shape index: {}]
  %s3 = inlined_call_operand.hbm [shape: f32[2,64,384], index: 3, kind: output, shape index: {}]
  %s4 = sld [smem:[#allocation0]]
  $region68: #{tpu_custom_call.1} parent=0
    _
  %s6 = ssub.s32 1, %s4
  %s7 = scalar_select 0, %s6, %s4
  $region1: #{tpu_custom_call.1} parent=0
    #allocation3 [shape = 'u8[32768]{0}', space=vmem, size = 0x8000, scoped, tag = 'input window, operand 0']
    #allocation4 [shape = 's32[2]{0}', space=sflag, size = 0x8, scoped, tag = 'scoped memory for tpu_custom_call.1']
    #allocation5 [shape = 's32[2]{0}', space=sflag, size = 0x8, scoped, tag = 'scoped memory for tpu_custom_call.1']
    #allocation6 [shape = 'u8[8192]{0}', space=vmem, size = 0x2000, scoped, tag = 'input window, operand 1']
    #allocation7 [shape = 's32[2]{0}', space=sflag, size = 0x8, scoped, tag = 'scoped memory for tpu_custom_call.1']
    #allocation8 [shape = 'u8[8192]{0}', space=vmem, size = 0x2000, scoped, tag = 'input window, operand 2']
    #allocation9 [shape = 'u8[32768]{0}', space=vmem, size = 0x8000, scoped, tag = 'output window, operand 0']
    %8 = vsyncpa [#allocation4], 0
    %s9 = scalar_lea.sflag [#allocation4], 1
    %10 = vsyncpa %s9, 0
    %11 = vsyncpa [#allocation7], 0
    %s12 = scalar_lea.sflag [#allocation7], 1
    %13 = vsyncpa %s12, 0
    %14 = vsyncpa [#allocation5], 0
    %s15 = scalar_lea.sflag [#allocation5], 1
    %16 = vsyncpa %s15, 0
    loop: start=0, step=1, limit=14
    $region2: #{tpu_custom_call.1} parent=1 // loop_pre_header
      _
    $region3: #{tpu_custom_call.1} parent=1 // loop_header
      %s18 = sphi 0, %s22
      %p19 = scmp.ge.s32.totalorder %s18, 14
      %s25 = sphi 0, %s44
      %s26 = sphi 0, %s40
      %s27 = sphi 0, %s36
      %s28 = sphi 0, %s25
      %s29 = sphi 0, %s26
      %s30 = sphi 0, %s27
      %s31 = sphi 0, %s28
      %s32 = sphi 0, %s29
      %s33 = sphi 0, %s30
      %s51 = sphi 0, %s53
      %s54 = sphi 0, %s51
      %s55 = sphi 0, %s54
      %s71 = sphi 0, %s55
      %s77 = sphi 0, %s79
      %s80 = sphi 0, %s77
      %s81 = sphi 0, %s80
      %s97 = sphi 0, %s81
      %s103 = sphi 0, %s105
      %s106 = sphi 0, %s103
      %s107 = sphi 0, %s106
      %s123 = sphi 0, %s107
      %s133 = sphi 0, %s135
      %s136 = sphi 0, %s133
      %s137 = sphi 0, %s136
      %s153 = sphi 0, %s137
    $region4: #{tpu_custom_call.1} parent=1 // loop_header_branch
      %21 = sbr.rel (%p19) target = $region8
    $region5: #{tpu_custom_call.1} parent=1 // loop_body
      %s23 = ssub.s32 %s18, 1
      %s24 = ssub.s32 %s18, 2
      %s34 = sadd.s32 1, %s27
      %p35 = scmp.ge.s32.totalorder %s34, 2
      %s36 = scalar_select %p35, 0, %s34
      %s37 = sadd.s32 1, %s26
      %s38 = scalar_select %p35, %s37, %s26
      %p39 = scmp.ge.s32.totalorder %s38, 3
      %s40 = scalar_select %p39, 0, %s38
      %s41 = sadd.s32 1, %s25
      %s42 = scalar_select %p39, %s41, %s25
      %p43 = scmp.ge.s32.totalorder %s42, 2
      %s44 = scalar_select %p43, 0, %s42
      %s45 = ssub.s32 %s25, %s44
      %s46 = ssub.s32 %s27, %s36
      %s47 = sor.u32 %s45, %s46
      %s48 = ssub.s32 %s26, %s40
      %s49 = sor.u32 %s47, %s48
      %p50 = scmp.eq.s32.totalorder %s49, 0
      %s52 = sadd.s32 %s51, 1
      %s53 = scalar_select %p50, %s51, %s52
      %p56 = pneg %p50
      %p57 = scmp.eq.s32.totalorder %s18, 11
      %p58 = por %p56, %p57
      %p59 = scmp.ne.s32.totalorder %s51, %s54
      %p60 = scmp.eq.s32.totalorder %s18, 0
      %p61 = por %p59, %p60
      %p62 = scmp.ne.s32.totalorder %s51, %s54
      %p63 = scmp.eq.s32.totalorder %s23, 11
      %p64 = por %p62, %p63
      %p65 = scmp.ne.s32.totalorder %s54, %s55
      %p66 = scmp.eq.s32.totalorder %s23, 0
      %p67 = por %p65, %p66
      %p68 = scmp.ne.s32.totalorder %s54, %s55
      %p69 = scmp.eq.s32.totalorder %s24, 11
      %p70 = por %p68, %p69
      %p72 = scmp.ne.s32.totalorder %s55, %s71
      %p73 = scmp.eq.s32.totalorder %s24, 0
      %p74 = por %p72, %p73
      %s75 = ssub.s32 %s26, %s40
      %p76 = scmp.eq.s32.totalorder %s75, 0
      %s78 = sadd.s32 %s77, 1
      %s79 = scalar_select %p76, %s77, %s78
      %p82 = pneg %p76
      %p83 = scmp.eq.s32.totalorder %s18, 11
      %p84 = por %p82, %p83
      %p85 = scmp.ne.s32.totalorder %s77, %s80
      %p86 = scmp.eq.s32.totalorder %s18, 0
      %p87 = por %p85, %p86
      %p88 = scmp.ne.s32.totalorder %s77, %s80
      %p89 = scmp.eq.s32.totalorder %s23, 11
      %p90 = por %p88, %p89
      %p91 = scmp.ne.s32.totalorder %s80, %s81
      %p92 = scmp.eq.s32.totalorder %s23, 0
      %p93 = por %p91, %p92
      %p94 = scmp.ne.s32.totalorder %s80, %s81
      %p95 = scmp.eq.s32.totalorder %s24, 11
      %p96 = por %p94, %p95
      %p98 = scmp.ne.s32.totalorder %s81, %s97
      %p99 = scmp.eq.s32.totalorder %s24, 0
      %p100 = por %p98, %p99
      %s101 = ssub.s32 %s26, %s40
      %p102 = scmp.eq.s32.totalorder %s101, 0
      %s104 = sadd.s32 %s103, 1
      %s105 = scalar_select %p102, %s103, %s104
      %p108 = pneg %p102
      %p109 = scmp.eq.s32.totalorder %s18, 11
      %p110 = por %p108, %p109
      %p111 = scmp.ne.s32.totalorder %s103, %s106
      %p112 = scmp.eq.s32.totalorder %s18, 0
      %p113 = por %p111, %p112
      %p114 = scmp.ne.s32.totalorder %s103, %s106
      %p115 = scmp.eq.s32.totalorder %s23, 11
      %p116 = por %p114, %p115
      %p117 = scmp.ne.s32.totalorder %s106, %s107
      %p118 = scmp.eq.s32.totalorder %s23, 0
      %p119 = por %p117, %p118
      %p120 = scmp.ne.s32.totalorder %s106, %s107
      %p121 = scmp.eq.s32.totalorder %s24, 11
      %p122 = por %p120, %p121
      %p124 = scmp.ne.s32.totalorder %s107, %s123
      %p125 = scmp.eq.s32.totalorder %s24, 0
      %p126 = por %p124, %p125
      %s127 = ssub.s32 %s25, %s44
      %s128 = ssub.s32 %s27, %s36
      %s129 = sor.u32 %s127, %s128
      %s130 = ssub.s32 %s26, %s40
      %s131 = sor.u32 %s129, %s130
      %p132 = scmp.eq.s32.totalorder %s131, 0
      %s134 = sadd.s32 %s133, 1
      %s135 = scalar_select %p132, %s133, %s134
      %p138 = pneg %p132
      %p139 = scmp.eq.s32.totalorder %s18, 11
      %p140 = por %p138, %p139
      %p141 = scmp.ne.s32.totalorder %s133, %s136
      %p142 = scmp.eq.s32.totalorder %s18, 0
      %p143 = por %p141, %p142
      %p144 = scmp.ne.s32.totalorder %s133, %s136
      %p145 = scmp.eq.s32.totalorder %s23, 11
      %p146 = por %p144, %p145
      %p147 = scmp.ne.s32.totalorder %s136, %s137
      %p148 = scmp.eq.s32.totalorder %s23, 0
      %p149 = por %p147, %p148
      %p150 = scmp.ne.s32.totalorder %s136, %s137
      %p151 = scmp.eq.s32.totalorder %s24, 11
      %p152 = por %p150, %p151
      %p154 = scmp.ne.s32.totalorder %s137, %s153
      %p155 = scmp.eq.s32.totalorder %s24, 0
      %p156 = por %p154, %p155
      %p157 = scmp.le.s32.totalorder 1, %s18
      %p158 = scmp.lt.s32.totalorder %s18, 13
      %p159 = pnand %p157, %p158
      %p160 = pneg %p159
      // Predicated region
      $region9: #{tpu_custom_call.1} parent=5 // pred_check
        _
      $region10: #{tpu_custom_call.1} parent=5 // pred_check_branch
        %162 = sbr.rel (%p159) target = $region12
      $region11: #{tpu_custom_call.1} parent=5 // pred_region
        %s163 = ssub.s32 %s18, 1
      $region12: #{tpu_custom_call.1} parent=5 // pred_fallthru
        _
      %p164 = scmp.lt.s32.totalorder %s18, 12
      // Predicated region
      $region13: #{tpu_custom_call.1} parent=5 // pred_check
        %p165 = pneg %p164
      $region14: #{tpu_custom_call.1} parent=5 // pred_check_branch
        %167 = sbr.rel (%p165) target = $region16
      $region15: #{tpu_custom_call.1} parent=5 // pred_region
        // Predicated region
        $region17: #{tpu_custom_call.1} parent=15 // pred_check
          %p168 = pneg %p61
        $region18: #{tpu_custom_call.1} parent=15 // pred_check_branch
          %170 = sbr.rel (%p168) target = $region20
        $region19: #{tpu_custom_call.1} parent=15 // pred_region
          %s171 = sand.u32 %s51, 1
          %s172 = scalar_lea.sflag [#allocation4], %s171
          %s173 = sand.u32 %s51, 1
          %s174 = smul.addr %s173, 32
          %s175 = scalar_lea.vmem [#allocation3], %s174
          %s176 = smul.u32 4, %s27
          %s178 = ssub.s32 512, 512
          %179 = vsyncadd %s172, %s178
          %s180 = smul.addr %s176, 3
          %s181 = sadd.s32 %s26, %s180
          %s182 = smul.addr %s25, 24
          %s183 = sadd.s32 %s181, %s182
          %s184 = smul.addr %s183, 128
          %s185 = scalar_lea.hbm %s0, %s184
          %s186 = sshll.u32 %s175, 4
          %s187 = int_to_ptr.vmem [resolvable:$true] %s186
          %192 = dma.hbm_to_vmem [thread:$0]  %s185, 512, %s187, %s172, 384, 128, 8
        $region20: #{tpu_custom_call.1} parent=15 // pred_fallthru
          _
        // Predicated region
        $region21: #{tpu_custom_call.1} parent=15 // pred_check
          %p193 = pneg %p87
        $region22: #{tpu_custom_call.1} parent=15 // pred_check_branch
          %195 = sbr.rel (%p193) target = $region24
        $region23: #{tpu_custom_call.1} parent=15 // pred_region
          %s196 = sand.u32 %s18, 1
          %s197 = scalar_lea.sflag [#allocation7], %s196
          %s198 = sand.u32 %s77, 1
          %s199 = smul.addr %s198, 8
          %s200 = scalar_lea.vmem [#allocation6], %s199
          %s202 = ssub.s32 128, 128
          %203 = vsyncadd %s197, %s202
          %s204 = smul.addr %s26, 128
          %s205 = scalar_lea.hbm %s1, %s204
          %s207 = sshll.u32 %s200, 4
          %s208 = int_to_ptr.vmem [resolvable:$true] %s207
          %210 = dma.hbm_to_vmem [thread:$0]  %s205, 128, %s208, %s197
        $region24: #{tpu_custom_call.1} parent=15 // pred_fallthru
          _
        // Predicated region
        $region25: #{tpu_custom_call.1} parent=15 // pred_check
          %p211 = pneg %p113
        $region26: #{tpu_custom_call.1} parent=15 // pred_check_branch
          %213 = sbr.rel (%p211) target = $region28
        $region27: #{tpu_custom_call.1} parent=15 // pred_region
          %s214 = sand.u32 %s18, 1
          %s215 = scalar_lea.sflag [#allocation7], %s214
          %s216 = sand.u32 %s103, 1
          %s217 = smul.addr %s216, 8
          %s218 = scalar_lea.vmem [#allocation8], %s217
          %s220 = ssub.s32 128, 128
          %221 = vsyncadd %s215, %s220
          %s222 = smul.addr %s26, 128
          %s223 = scalar_lea.hbm %s2, %s222
          %s225 = sshll.u32 %s218, 4
          %s226 = int_to_ptr.vmem [resolvable:$true] %s225
          %228 = dma.hbm_to_vmem [thread:$0]  %s223, 128, %s226, %s215
        $region28: #{tpu_custom_call.1} parent=15 // pred_fallthru
          _
      $region16: #{tpu_custom_call.1} parent=5 // pred_fallthru
        _
      %p229 = scmp.le.s32.totalorder 1, %s18
      %p230 = scmp.lt.s32.totalorder %s18, 13
      %p231 = pnand %p229, %p230
      %p232 = pneg %p231
      // Predicated region
      $region29: #{tpu_custom_call.1} parent=5 // pred_check
        _
      $region30: #{tpu_custom_call.1} parent=5 // pred_check_branch
        %234 = sbr.rel (%p231) target = $region32
      $region31: #{tpu_custom_call.1} parent=5 // pred_region
        %s235 = ssub.s32 %s18, 1
        %s236 = sand.u32 %s54, 1
        %s237 = scalar_lea.sflag [#allocation4], %s236
        %s238 = sand.u32 %s54, 1
        %s239 = smul.addr %s238, 32
        %s240 = scalar_lea.vmem [#allocation3], %s239
        // Predicated region
        $region33: #{tpu_custom_call.1} parent=31 // pred_check
          %p241 = pneg %p67
        $region34: #{tpu_custom_call.1} parent=31 // pred_check_branch
          %243 = sbr.rel (%p241) target = $region36
        $region35: #{tpu_custom_call.1} parent=31 // pred_region
          %244 = dma.done %s237, 512
        $region36: #{tpu_custom_call.1} parent=31 // pred_fallthru
          _
        %s245 = sand.u32 %s23, 1
        %s246 = scalar_lea.sflag [#allocation7], %s245
        %s247 = sand.u32 %s80, 1
        %s248 = smul.addr %s247, 8
        %s249 = scalar_lea.vmem [#allocation6], %s248
        // Predicated region
        $region37: #{tpu_custom_call.1} parent=31 // pred_check
          %p250 = pneg %p93
        $region38: #{tpu_custom_call.1} parent=31 // pred_check_branch
          %252 = sbr.rel (%p250) target = $region40
        $region39: #{tpu_custom_call.1} parent=31 // pred_region
          %253 = dma.done %s246, 128
        $region40: #{tpu_custom_call.1} parent=31 // pred_fallthru
          _
        %s254 = sand.u32 %s23, 1
        %s255 = scalar_lea.sflag [#allocation7], %s254
        %s256 = sand.u32 %s106, 1
        %s257 = smul.addr %s256, 8
        %s258 = scalar_lea.vmem [#allocation8], %s257
        // Predicated region
        $region41: #{tpu_custom_call.1} parent=31 // pred_check
          %p259 = pneg %p119
        $region42: #{tpu_custom_call.1} parent=31 // pred_check_branch
          %261 = sbr.rel (%p259) target = $region44
        $region43: #{tpu_custom_call.1} parent=31 // pred_region
          %262 = dma.done %s255, 128
        $region44: #{tpu_custom_call.1} parent=31 // pred_fallthru
          _
        %s263 = sand.u32 %s54, 1
        %s264 = scalar_lea.sflag [#allocation4], %s263
        %s265 = sand.u32 %s54, 1
        %s266 = smul.addr %s265, 32
        %s267 = scalar_lea.vmem [#allocation3], %s266
        %p268 = pneg %p67
        %p269 = pneg %p64
        %s270 = sand.u32 %s23, 1
        %s271 = scalar_lea.sflag [#allocation7], %s270
        %s272 = sand.u32 %s80, 1
        %s273 = smul.addr %s272, 8
        %s274 = scalar_lea.vmem [#allocation6], %s273
        %p275 = pneg %p93
        %p276 = pneg %p90
        %s277 = sand.u32 %s23, 1
        %s278 = scalar_lea.sflag [#allocation7], %s277
        %s279 = sand.u32 %s106, 1
        %s280 = smul.addr %s279, 8
        %s281 = scalar_lea.vmem [#allocation8], %s280
        %p282 = pneg %p119
        %p283 = pneg %p116
        %p284 = pneg %p149
        %p285 = pneg %p146
        %s286 = sand.u32 %s136, 1
        %s287 = scalar_lea.sflag [#allocation5], %s286
        %s288 = sand.u32 %s136, 1
        %s289 = smul.addr %s288, 32
        %s290 = scalar_lea.vmem [#allocation9], %s289
        %s291 = smul.u32 4, %s30
        %s292 = smul.u32 4, %s30
        %p293 = scmp.eq.s32.totalorder %s30, 0
        // Predicated region
        $region45: #{tpu_custom_call.1} parent=31 // pred_check
          %p294 = pneg %p293
        $region46: #{tpu_custom_call.1} parent=31 // pred_check_branch
          %296 = sbr.rel (%p294) target = $region48
        $region47: #{tpu_custom_call.1} parent=31 // pred_region
          %297 = vst [vmem:[#allocation2] sm:$0xff] 0.0
        $region48: #{tpu_custom_call.1} parent=31 // pred_fallthru
          _
        %v298 = vld [vmem:[%s249] sm:$0xff]
        %v299 = vld [vmem:[%s258] sm:$0xff]
        %v300 = vld [vmem:[#allocation2] sm:$0xff]
        loop: start=0, step=1, limit=4
        $region49: #{tpu_custom_call.1} parent=31 // loop_pre_header
          _
        $region50: #{tpu_custom_call.1} parent=31 // loop_header
          %s302 = sphi 0, %s306
          %p303 = scmp.ge.s32.totalorder %s302, 4
          %v307 = vphi %v300, %v407
        $region51: #{tpu_custom_call.1} parent=31 // loop_header_branch
          %305 = sbr.rel (%p303) target = $region55
        $region52: #{tpu_custom_call.1} parent=31 // loop_body
          %s308 = smul.u32 %s302, 8
          %s309 = scalar_lea.vmem %s240, %s308 [#allocation3]
          %v310 = vld [vmem:[%s309] sm:$0xff]
          %v311 = vmul.f32 %v298, %v307
          %v312 = vlaneseq
          %v313 = vshrl.u32 %v312, 7
          %v314 = vsub.s32 0, %v313
          %v315 = vrot.slane %v310, %v314
          %v316 = vadd.f32 %v311, %v315
          %v317 = vmul.f32 %v299, %v316
          %v318 = vrot.slane %v317, 4
          %v319 = vadd.f32 %v317, %v318
          %v320 = vrot.slane %v319, 2
          %v321 = vadd.f32 %v319, %v320
          %v322 = vrot.slane %v321, 1
          %v323 = vadd.f32 %v321, %v322
          %v324 = vmul.f32 %v298, %v316
          %v325 = vlaneseq
          %v326 = vshrl.u32 %v325, 7
          %v327 = vsub.s32 1, %v326
          %v328 = vrot.slane %v310, %v327
          %v329 = vadd.f32 %v324, %v328
          %v330 = vmul.f32 %v299, %v329
          %v331 = vrot.slane %v330, 4
          %v332 = vadd.f32 %v330, %v331
          %v333 = vrot.slane %v332, 2
          %v334 = vadd.f32 %v332, %v333
          %v335 = vrot.slane %v334, 1
          %v336 = vadd.f32 %v334, %v335
          %v337 = vmul.f32 %v298, %v329
          %v338 = vlaneseq
          %v339 = vshrl.u32 %v338, 7
          %v340 = vsub.s32 2, %v339
          %v341 = vrot.slane %v310, %v340
          %v342 = vadd.f32 %v337, %v341
          %v343 = vmul.f32 %v299, %v342
          %v344 = vrot.slane %v343, 4
          %v345 = vadd.f32 %v343, %v344
          %v346 = vrot.slane %v345, 2
          %v347 = vadd.f32 %v345, %v346
          %v348 = vrot.slane %v347, 1
          %v349 = vadd.f32 %v347, %v348
          %v350 = vmul.f32 %v298, %v342
          %v351 = vlaneseq
          %v352 = vshrl.u32 %v351, 7
          %v353 = vsub.s32 3, %v352
          %v354 = vrot.slane %v310, %v353
          %v355 = vadd.f32 %v350, %v354
          %v356 = vmul.f32 %v299, %v355
          %v357 = vrot.slane %v356, 4
          %v358 = vadd.f32 %v356, %v357
          %v359 = vrot.slane %v358, 2
          %v360 = vadd.f32 %v358, %v359
          %v361 = vrot.slane %v360, 1
          %v362 = vadd.f32 %v360, %v361
          %v363 = vmul.f32 %v298, %v355
          %v364 = vlaneseq
          %v365 = vshrl.u32 %v364, 7
          %v366 = vsub.s32 4, %v365
          %v367 = vrot.slane %v310, %v366
          %v368 = vadd.f32 %v363, %v367
          %v369 = vmul.f32 %v299, %v368
          %v370 = vrot.slane %v369, 4
          %v371 = vadd.f32 %v369, %v370
          %v372 = vrot.slane %v371, 2
          %v373 = vadd.f32 %v371, %v372
          %v374 = vrot.slane %v373, 1
          %v375 = vadd.f32 %v373, %v374
          %v376 = vmul.f32 %v298, %v368
          %v377 = vlaneseq
          %v378 = vshrl.u32 %v377, 7
          %v379 = vsub.s32 5, %v378
          %v380 = vrot.slane %v310, %v379
          %v381 = vadd.f32 %v376, %v380
          %v382 = vmul.f32 %v299, %v381
          %v383 = vrot.slane %v382, 4
          %v384 = vadd.f32 %v382, %v383
          %v385 = vrot.slane %v384, 2
          %v386 = vadd.f32 %v384, %v385
          %v387 = vrot.slane %v386, 1
          %v388 = vadd.f32 %v386, %v387
          %v389 = vmul.f32 %v298, %v381
          %v390 = vlaneseq
          %v391 = vshrl.u32 %v390, 7
          %v392 = vsub.s32 6, %v391
          %v393 = vrot.slane %v310, %v392
          %v394 = vadd.f32 %v389, %v393
          %v395 = vmul.f32 %v299, %v394
          %v396 = vrot.slane %v395, 4
          %v397 = vadd.f32 %v395, %v396
          %v398 = vrot.slane %v397, 2
          %v399 = vadd.f32 %v397, %v398
          %v400 = vrot.slane %v399, 1
          %v401 = vadd.f32 %v399, %v400
          %v402 = vmul.f32 %v298, %v394
          %v403 = vlaneseq
          %v404 = vshrl.u32 %v403, 7
          %v405 = vsub.s32 7, %v404
          %v406 = vrot.slane %v310, %v405
          %v407 = vadd.f32 %v402, %v406
          %v408 = vmul.f32 %v299, %v407
          %v409 = vrot.slane %v408, 4
          %v410 = vadd.f32 %v408, %v409
          %v411 = vrot.slane %v410, 2
          %v412 = vadd.f32 %v410, %v411
          %v413 = vrot.slane %v412, 1
          %v414 = vadd.f32 %v412, %v413
          %vm415 = vcmask 1040384
          %v416 = vsel %vm415, %v323, %v336
          %vm417 = vcmask 1041408
          %v418 = vsel %vm417, %v416, %v349
          %vm419 = vcmask 1042432
          %v420 = vsel %vm419, %v418, %v362
          %vm421 = vcmask 1043456
          %v422 = vsel %vm421, %v420, %v375
          %vm423 = vcmask 1044480
          %v424 = vsel %vm423, %v422, %v388
          %vm425 = vcmask 1045504
          %v426 = vsel %vm425, %v424, %v401
          %vm427 = vcmask 1046528
          %v428 = vsel %vm427, %v426, %v414
          %s429 = scalar_lea.vmem %s290, %s308 [#allocation9]
          %430 = vst [vmem:[%s429] sm:$0xff] %v428
        $region53: #{tpu_custom_call.1} parent=31 // loop_footer
          %s306 = sadd.s32 1, %s302
        $region54: #{tpu_custom_call.1} parent=31 // loop_footer_branch
          %301 = sbr.rel target = $region50
        $region55: #{tpu_custom_call.1} parent=31 // loop_exit
          _
        %431 = vst [vmem:[#allocation2] sm:$0xff] %v307
        %s432 = sand.u32 %s136, 1
        %s433 = scalar_lea.sflag [#allocation5], %s432
        %s434 = sand.u32 %s136, 1
        %s435 = smul.addr %s434, 32
        %s436 = scalar_lea.vmem [#allocation9], %s435
        // Predicated region
        $region56: #{tpu_custom_call.1} parent=31 // pred_check
          %p437 = pneg %p146
        $region57: #{tpu_custom_call.1} parent=31 // pred_check_branch
          %439 = sbr.rel (%p437) target = $region59
        $region58: #{tpu_custom_call.1} parent=31 // pred_region
          %s440 = smul.u32 4, %s30
          %s442 = ssub.s32 512, 512
          %443 = vsyncadd %s433, %s442
          %s444 = smul.addr %s440, 3
          %s445 = sadd.s32 %s29, %s444
          %s446 = smul.addr %s28, 24
          %s447 = sadd.s32 %s445, %s446
          %s448 = smul.addr %s447, 128
          %s449 = scalar_lea.hbm %s3, %s448
          %s450 = sshll.u32 %s436, 4
          %s451 = int_to_ptr.vmem [resolvable:$true] %s450
          %456 = dma.vmem_to_hbm [thread:$0]  %s451, 512, %s449, %s433, 128, 384, 8
        $region59: #{tpu_custom_call.1} parent=31 // pred_fallthru
          _
      $region32: #{tpu_custom_call.1} parent=5 // pred_fallthru
        _
      %p457 = scmp.le.s32.totalorder 2, %s18
      // Predicated region
      $region60: #{tpu_custom_call.1} parent=5 // pred_check
        %p458 = pneg %p457
      $region61: #{tpu_custom_call.1} parent=5 // pred_check_branch
        %460 = sbr.rel (%p458) target = $region63
      $region62: #{tpu_custom_call.1} parent=5 // pred_region
        %s461 = ssub.s32 %s18, 2
        // Predicated region
        $region64: #{tpu_custom_call.1} parent=62 // pred_check
          %p462 = pneg %p152
        $region65: #{tpu_custom_call.1} parent=62 // pred_check_branch
          %464 = sbr.rel (%p462) target = $region67
        $region66: #{tpu_custom_call.1} parent=62 // pred_region
          %s465 = sand.u32 %s137, 1
          %s466 = scalar_lea.sflag [#allocation5], %s465
          %s467 = sand.u32 %s137, 1
          %s468 = smul.addr %s467, 32
          %s469 = scalar_lea.vmem [#allocation9], %s468
          %470 = dma.done %s466, 512
        $region67: #{tpu_custom_call.1} parent=62 // pred_fallthru
          _
      $region63: #{tpu_custom_call.1} parent=5 // pred_fallthru
        _
    $region6: #{tpu_custom_call.1} parent=1 // loop_footer
      %s22 = sadd.s32 1, %s18
    $region7: #{tpu_custom_call.1} parent=1 // loop_footer_branch
      %17 = sbr.rel target = $region3
    $region8: #{tpu_custom_call.1} parent=1 // loop_exit
      _
    %471 = vsyncpa [#allocation4], 1
    %s472 = scalar_lea.sflag [#allocation4], 1
    %473 = vsyncpa %s472, 1
    %474 = vsyncpa [#allocation7], 1
    %s475 = scalar_lea.sflag [#allocation7], 1
    %476 = vsyncpa %s475, 1
    %477 = vsyncpa [#allocation5], 1
    %s478 = scalar_lea.sflag [#allocation5], 1
    %479 = vsyncpa %s478, 1

</llo_original>
